<compile_context>
chip_gen: v7x
topology: tpu7x:2x2x1
jax: 0.10.0
libtpu: 0.0.40
codegen_flags: <defaults>
</compile_context>

<pallas_src>
import jax
import jax.numpy as jnp
import numpy as np
from jax.experimental import pallas as pl
from jax.experimental.pallas import tpu as pltpu

# Hyper-parameters implied by the PyTorch script
HIDDEN = 2        # hidden_size
N_WORD = 3        # word embedding vocab
EMO_VOCAB = 5     # emotion embedding vocab
EMO_DIM = 5       # emotion embedding dim
NUM_LAYERS = 2
OUTPUT = 3        # output_size (chosen = n_word)
BATCH = 2
SEQ = 8

PARAM_COLS = 8    # lane width of the packed parameter slab (>= 3*HIDDEN)


# --------------------------------------------------------------------------
# Static layout of the packed parameter slab: (row_start, n_rows, n_cols).
# Every block's row_start is 8-aligned so in-kernel slices never straddle a
# (8,128) sublane tile boundary (no relayout copies).
# --------------------------------------------------------------------------
def _build_layout():
    layout = {}
    row = 0

    def add(name, nrows, ncols):
        nonlocal row
        assert ncols <= PARAM_COLS
        layout[name] = (row, nrows, ncols)
        row += ((nrows + 7) // 8) * 8          # 8-align the next block start

    # GRU weights, gates fused -> (K, 3H) blocks (r|z|n along lanes)
    add("wi0_emb", HIDDEN, 3 * HIDDEN)     # word-embedding rows of w_ih0
    add("wi0_emo", EMO_DIM, 3 * HIDDEN)    # emotion-embedding rows of w_ih0
    add("wh0", HIDDEN, 3 * HIDDEN)
    add("wi1", HIDDEN, 3 * HIDDEN)
    add("wh1", HIDDEN, 3 * HIDDEN)
    # fused (1, 3H) bias rows (input / hidden kept separate for the n gate)
    add("b_i0", 1, 3 * HIDDEN)
    add("b_h0", 1, 3 * HIDDEN)
    add("b_i1", 1, 3 * HIDDEN)
    add("b_h1", 1, 3 * HIDDEN)
    # attn_combine split into ct / rnn halves (no lane concat in-kernel)
    add("wac_ct", HIDDEN, HIDDEN)
    add("wac_rnn", HIDDEN, HIDDEN)
    add("b_ac", 1, HIDDEN)
    add("w_out", HIDDEN, OUTPUT)
    add("b_out", 1, OUTPUT)
    return layout, row


_LAYOUT, _PARAM_ROWS = _build_layout()


def prepare_params(params):
    """Pack weights ONCE per weight set (hoisted out of the per-step path).

    Built with numpy so the decode-step path contains zero XLA glue ops.
    Returns a dict with the packed slab and the (vocab, 1, dim) embedding
    tables used for in-kernel gathers.
    """
    slab = np.zeros((_PARAM_ROWS, PARAM_COLS), np.float32)

    def put(name, mat):
        r0, nr, nc = _LAYOUT[name]
        slab[r0:r0 + nr, 0:nc] = np.asarray(mat, np.float32)

    H = HIDDEN
    put("wi0_emb", params['w_ih0'][:H, :])
    put("wi0_emo", params['w_ih0'][H:, :])
    put("wh0", params['w_hh0'])
    put("wi1", params['w_ih1'])
    put("wh1", params['w_hh1'])
    put("b_i0", params['b_ih0'])
    put("b_h0", params['b_hh0'])
    put("b_i1", params['b_ih1'])
    put("b_h1", params['b_hh1'])
    put("wac_ct", params['w_ac'][:H, :])
    put("wac_rnn", params['w_ac'][H:, :])
    put("b_ac", params['b_ac'])
    put("w_out", params['w_out'])
    put("b_out", params['b_out'])

    return dict(
        slab=jnp.asarray(slab),
        emb_tbl=jnp.asarray(params['embedding'], jnp.float32)
                   .reshape(N_WORD, 1, HIDDEN),
        emo_tbl=jnp.asarray(params['emotion_embedding'], jnp.float32)
                   .reshape(EMO_VOCAB, 1, EMO_DIM),
    )


# --------------------------------------------------------------------------
# Kernel: one grid step == one decode step.
# --------------------------------------------------------------------------
def attn_dec_kernel(tok_ref, eidx_ref,                       # SMEM (scalar prefetch)
                    emb_tbl_ref, emo_tbl_ref, h_in_ref, enc_ref, p_ref,  # VMEM in
                    logits_ref, h_out_ref):                  # VMEM out
    t = pl.program_id(0)
    B = h_in_ref.shape[1]
    H = HIDDEN

    # Hidden state lives in the resident (constant-index) output block and
    # carries across decode steps; initialized once from the aliased input.
    @pl.when(t == 0)
    def _():
        h_out_ref[...] = h_in_ref[...]

    def blk(name):
        r0, nr, nc = _LAYOUT[name]
        return p_ref[r0:r0 + nr, 0:nc]

    def mv(x, wname, bname=None):
        # (B, K) @ (K, N) (+ bias) as an unrolled K-step FMA on 2-D
        # lane-major operands: pure VALU work, no MXU push->pop, no XLU
        # sublane reduce, no (B, K, 1) relayout of the activation.
        w = blk(wname)
        acc = blk(bname) if bname is not None else None
        for k in range(w.shape[0]):
            term = x[:, k:k + 1] * w[k:k + 1, :]
            acc = term if acc is None else acc + term
        return acc

    # ----- in-kernel embedding gathers (indices scalar-prefetched to SMEM)
    # TODO(synk): F.dropout on the embedded input / between GRU layers is
    # identity (eval semantics).
    emb_in = jnp.concatenate(
        [emb_tbl_ref[tok_ref[t, b]] for b in range(B)], axis=0)    # (B, H)
    emb_emo = jnp.concatenate(
        [emo_tbl_ref[eidx_ref[b]] for b in range(B)], axis=0)      # (B, EMO_DIM)

    h0 = h_out_ref[0, :, :]                                        # (B, H)
    h1 = h_out_ref[1, :, :]                                        # (B, H)

    # ----- GRU layer 0 (input = [emb_in ; emb_emo] handled as two row blocks)
    #       gates fused: one (B, 3H) product per weight block, lane slices r/z/n
    gi0 = mv(emb_in, "wi0_emb", "b_i0") + mv(emb_emo, "wi0_emo")
    gh0 = mv(h0, "wh0", "b_h0")
    r0g = jax.nn.sigmoid(gi0[:, 0:H] + gh0[:, 0:H])
    z0g = jax.nn.sigmoid(gi0[:, H:2 * H] + gh0[:, H:2 * H])
    n0g = jnp.tanh(gi0[:, 2 * H:3 * H] + r0g * gh0[:, 2 * H:3 * H])
    h0_new = (1.0 - z0g) * n0g + z0g * h0

    # ----- GRU layer 1
    gi1 = mv(h0_new, "wi1", "b_i1")
    gh1 = mv(h1, "wh1", "b_h1")
    r1g = jax.nn.sigmoid(gi1[:, 0:H] + gh1[:, 0:H])
    z1g = jax.nn.sigmoid(gi1[:, H:2 * H] + gh1[:, H:2 * H])
    n1g = jnp.tanh(gi1[:, 2 * H:3 * H] + r1g * gh1[:, 2 * H:3 * H])
    h1_new = (1.0 - z1g) * n1g + z1g * h1

    h_out_ref[0, :, :] = h0_new                # resident: written back once,
    h_out_ref[1, :, :] = h1_new                # after the last decode step

    # ----- Luong dot attention; enc is (B, H, S): sequence axis lane-dense.
    rnn = h1_new
    enc = enc_ref[...]                                       # (B, H, S)
    score = rnn[:, 0:1] * enc[:, 0, :]
    for hh in range(1, H):
        score = score + rnn[:, hh:hh + 1] * enc[:, hh, :]    # (B, S)
    score = score - jnp.max(score, axis=1, keepdims=True)    # stable softmax
    e = jnp.exp(score)
    # EUP approximate reciprocal instead of a VPU divide sequence.
    at = e * pl.reciprocal(jnp.sum(e, axis=1, keepdims=True), approx=True)
    ct = jnp.sum(at[:, None, :] * enc, axis=2)               # (B, H)

    # ----- attn_combine (split weight -> no lane concat) + output projection
    attn_out = jnp.tanh(mv(ct, "wac_ct") + mv(rnn, "wac_rnn", "b_ac"))
    # TODO(synk): for long decode runs a lane-dense (padded) logits layout
    # would avoid per-step masked stores; at OUTPUT=3 / small T it is noise.
    logits_ref[0, :, :] = mv(attn_out, "w_out", "b_out")


# --------------------------------------------------------------------------
# Wrappers
# --------------------------------------------------------------------------
def attn_dec_decode_pallas(tokens, emotion, hiddens, encoder_output, packed):
    """Run T teacher-forced decode steps inside ONE pallas_call.

    tokens:  (T, B) int32 token ids (one per decode step)
    emotion: (B,) or (B, 1) int32 emotion ids (constant across steps)
    Returns (logits (T, B, OUTPUT), [h0, h1]) with the final hidden states.
    """
    tokens = jnp.asarray(tokens, jnp.int32)
    emotion = jnp.asarray(emotion, jnp.int32)
    if emotion.ndim == 2:
        emotion = emotion[:, 0]
    T, B = tokens.shape

    # Per-sequence (not per-step) glue: done once per decode call.
    h_in = jnp.stack([hiddens[0], hiddens[1]])           # (L, B, H)
    enc_t = jnp.swapaxes(encoder_output, 1, 2)           # (B, H, S) lane-dense seq
    S = enc_t.shape[2]

    grid_spec = pltpu.PrefetchScalarGridSpec(
        num_scalar_prefetch=2,                           # tokens, emotion -> SMEM
        grid=(T,),
        in_specs=[
            pl.BlockSpec((N_WORD, 1, HIDDEN), lambda t, tok, emo: (0, 0, 0)),
            pl.BlockSpec((EMO_VOCAB, 1, EMO_DIM), lambda t, tok, emo: (0, 0, 0)),
            pl.BlockSpec((NUM_LAYERS, B, HIDDEN), lambda t, tok, emo: (0, 0, 0)),
            pl.BlockSpec((B, HIDDEN, S), lambda t, tok, emo: (0, 0, 0)),
            pl.BlockSpec((_PARAM_ROWS, PARAM_COLS), lambda t, tok, emo: (0, 0)),
        ],
        out_specs=(
            pl.BlockSpec((1, B, OUTPUT), lambda t, tok, emo: (t, 0, 0)),
            pl.BlockSpec((NUM_LAYERS, B, HIDDEN), lambda t, tok, emo: (0, 0, 0)),
        ),
    )

    logits, h_out = pl.pallas_call(
        attn_dec_kernel,
        out_shape=(
            jax.ShapeDtypeStruct((T, B, OUTPUT), jnp.float32),
            jax.ShapeDtypeStruct((NUM_LAYERS, B, HIDDEN), jnp.float32),
        ),
        grid_spec=grid_spec,
        # inputs: tokens(0), emotion(1), emb_tbl(2), emo_tbl(3), h_in(4),
        #         enc_t(5), slab(6)  ->  alias h_in to output 1 (h_out).
        input_output_aliases={4: 1},
        compiler_params=pltpu.CompilerParams(
            dimension_semantics=("arbitrary",)),         # steps are sequential
    )(tokens, emotion, packed['emb_tbl'], packed['emo_tbl'], h_in, enc_t,
      packed['slab'])
    return logits, [h_out[0], h_out[1]]


def attn_dec_pallas(input_step, emotion, hiddens, encoder_output, packed):
    """Single decode step -- matches the PyTorch module's forward()."""
    tokens = jnp.asarray(input_step, jnp.int32)[:, 0][None, :]   # (1, B)
    logits, new_hiddens = attn_dec_decode_pallas(
        tokens, emotion, hiddens, encoder_output, packed)
    return logits[0], new_hiddens


# --------------------------------------------------------------------------
# Pure-JAX reference (eval / no dropout) — PyTorch GRUCell semantics
# --------------------------------------------------------------------------
def reference_forward(input_step, emotion_idx, hiddens, encoder_output, params):
    emb_input = params['embedding'][input_step[:, 0]]
    emb_emotion = params['emotion_embedding'][emotion_idx[:, 0]]
    x = jnp.concatenate([emb_input, emb_emotion], axis=1)

    def gru(x, h, wih, whh, bih, bhh):
        H = h.shape[1]
        gi = x @ wih + bih
        gh = h @ whh + bhh
        r = jax.nn.sigmoid(gi[:, :H] + gh[:, :H])
        z = jax.nn.sigmoid(gi[:, H:2 * H] + gh[:, H:2 * H])
        n = jnp.tanh(gi[:, 2 * H:] + r * gh[:, 2 * H:])
        return (1.0 - z) * n + z * h

    h0 = gru(x, hiddens[0], params['w_ih0'], params['w_hh0'],
             params['b_ih0'], params['b_hh0'])
    h1 = gru(h0, hiddens[1], params['w_ih1'], params['w_hh1'],
             params['b_ih1'], params['b_hh1'])
    rnn_output = h1
    score = jnp.sum(rnn_output[:, None, :] * encoder_output, axis=2)
    at = jax.nn.softmax(score, axis=1)
    ct = jnp.sum(at[:, :, None] * encoder_output, axis=1)
    concat = jnp.concatenate([ct, rnn_output], axis=1)
    attn_out = jnp.tanh(concat @ params['w_ac'] + params['b_ac'])
    logits = attn_out @ params['w_out'] + params['b_out']
    return logits, [h0, h1]


def init_params(key):
    ks = jax.random.split(key, 14)

    def rnd(k, shape, scale=0.2):
        return jax.random.normal(k, shape, dtype=jnp.float32) * scale

    in0 = HIDDEN + EMO_DIM
    params = dict(
        # padding_idx=0 -> zero row 0
        embedding=rnd(ks[0], (N_WORD, HIDDEN)).at[0].set(0.0),
        emotion_embedding=rnd(ks[1], (EMO_VOCAB, EMO_DIM)).at[0].set(0.0),
        w_ih0=rnd(ks[2], (in0, 3 * HIDDEN)),
        w_hh0=rnd(ks[3], (HIDDEN, 3 * HIDDEN)),
        b_ih0=rnd(ks[4], (1, 3 * HIDDEN)),
        b_hh0=rnd(ks[5], (1, 3 * HIDDEN)),
        w_ih1=rnd(ks[6], (HIDDEN, 3 * HIDDEN)),
        w_hh1=rnd(ks[7], (HIDDEN, 3 * HIDDEN)),
        b_ih1=rnd(ks[8], (1, 3 * HIDDEN)),
        b_hh1=rnd(ks[9], (1, 3 * HIDDEN)),
        w_ac=rnd(ks[10], (2 * HIDDEN, HIDDEN)),
        b_ac=rnd(ks[11], (1, HIDDEN)),
        w_out=rnd(ks[12], (HIDDEN, OUTPUT)),
        b_out=rnd(ks[13], (1, OUTPUT)),
    )
    return params


if __name__ == "__main__":
    key = jax.random.PRNGKey(0)
    kp, ki, kh0, kh1, ke, kt = jax.random.split(key, 6)

    params = init_params(kp)
    packed = prepare_params(params)            # ONCE per weight set (hoisted)

    input_step = jax.random.randint(ki, (BATCH, 1), 1, N_WORD, dtype=jnp.int32)
    emotion_idx = jnp.array([[1], [1]], dtype=jnp.int32)     # from the script
    hiddens = [jax.random.normal(kh0, (BATCH, HIDDEN), dtype=jnp.float32) * 0.5,
               jax.random.normal(kh1, (BATCH, HIDDEN), dtype=jnp.float32) * 0.5]
    encoder_output = jax.random.normal(ke, (BATCH, SEQ, HIDDEN),
                                       dtype=jnp.float32)

    # ---- single decode step (module forward semantics) --------------------
    logits, new_hiddens = attn_dec_pallas(
        input_step, emotion_idx, hiddens, encoder_output, packed)
    jax.block_until_ready(logits)
    jax.block_until_ready(new_hiddens)

    ref_logits, ref_hiddens = reference_forward(
        input_step, emotion_idx, hiddens, encoder_output, params)

    np.testing.assert_allclose(np.asarray(new_hiddens[0]),
                               np.asarray(ref_hiddens[0]), rtol=1e-5, atol=1e-5)
    np.testing.assert_allclose(np.asarray(new_hiddens[1]),
                               np.asarray(ref_hiddens[1]), rtol=1e-5, atol=1e-5)
    # Slightly looser tolerance on the logits only: the softmax denominator
    # uses the EUP approximate reciprocal (per perf guidance).
    np.testing.assert_allclose(np.asarray(logits), np.asarray(ref_logits),
                               rtol=5e-3, atol=2e-3)

    # ---- fused multi-step decode: T teacher-forced steps, ONE pallas_call --
    T = 4
    tokens = jax.random.randint(kt, (T, BATCH), 1, N_WORD, dtype=jnp.int32)
    mlogits, mhiddens = attn_dec_decode_pallas(
        tokens, emotion_idx, hiddens, encoder_output, packed)
    jax.block_until_ready(mlogits)
    jax.block_until_ready(mhiddens)

    rh = [hiddens[0], hiddens[1]]
    ref_steps = []
    for t in range(T):
        lg, rh = reference_forward(tokens[t][:, None], emotion_idx, rh,
                                   encoder_output, params)
        ref_steps.append(lg)
    ref_mlogits = jnp.stack(ref_steps)

    np.testing.assert_allclose(np.asarray(mhiddens[0]), np.asarray(rh[0]),
                               rtol=1e-5, atol=1e-5)
    np.testing.assert_allclose(np.asarray(mhiddens[1]), np.asarray(rh[1]),
                               rtol=1e-5, atol=1e-5)
    np.testing.assert_allclose(np.asarray(mlogits), np.asarray(ref_mlogits),
                               rtol=5e-3, atol=2e-3)

    print("KERNEL_OK")
</pallas_src>

<mosaic_0001>
module attributes {stable_mosaic.version = 11 : i64} {
  func.func @attn_dec_kernel(%arg0: i32, %arg1: memref<1x2xi32, #tpu.memory_space<smem>>, %arg2: memref<2xi32, #tpu.memory_space<smem>>, %arg3: memref<3x1x2xf32, #tpu.memory_space<vmem>>, %arg4: memref<5x1x5xf32, #tpu.memory_space<vmem>>, %arg5: memref<2x2x2xf32, #tpu.memory_space<vmem>>, %arg6: memref<2x2x8xf32, #tpu.memory_space<vmem>>, %arg7: memref<112x8xf32, #tpu.memory_space<vmem>>, %arg8: memref<1x2x3xf32, #tpu.memory_space<vmem>>, %arg9: memref<2x2x2xf32, #tpu.memory_space<vmem>>) attributes {dimension_semantics = [#tpu.dimension_semantics<arbitrary>], iteration_bounds = array<i64: 1>, scalar_prefetch = 2 : i64, scratch_operands = 0 : i64, tpu.core_type = #tpu.core_type<tc>, window_params = [{pipeline_mode = #tpu.pipeline_mode<synchronous>, transform_indices = @transform_0, window_bounds = array<i64: 3, 1, 2>}, {pipeline_mode = #tpu.pipeline_mode<synchronous>, transform_indices = @transform_1, window_bounds = array<i64: 5, 1, 5>}, {pipeline_mode = #tpu.pipeline_mode<synchronous>, transform_indices = @transform_2, window_bounds = array<i64: 2, 2, 2>}, {pipeline_mode = #tpu.pipeline_mode<synchronous>, transform_indices = @transform_3, window_bounds = array<i64: 2, 2, 8>}, {pipeline_mode = #tpu.pipeline_mode<synchronous>, transform_indices = @transform_4, window_bounds = array<i64: 112, 8>}, {transform_indices = @transform_5, window_bounds = array<i64: 1, 2, 3>}, {pipeline_mode = #tpu.pipeline_mode<synchronous>, transform_indices = @transform_6, window_bounds = array<i64: 2, 2, 2>}]} {
    %c0_i32 = arith.constant 0 : i32
    %0 = arith.cmpi eq, %arg0, %c0_i32 : i32
    %1 = arith.extui %0 : i1 to i32
    %c0_i32_0 = arith.constant 0 : i32
    %2 = arith.cmpi ne, %1, %c0_i32_0 : i32
    scf.if %2 {
      %c0_52 = arith.constant 0 : index
      %c0_53 = arith.constant 0 : index
      %c0_54 = arith.constant 0 : index
      %249 = vector.load %arg5[%c0_52, %c0_53, %c0_54] : memref<2x2x2xf32, #tpu.memory_space<vmem>>, vector<2x2x2xf32>
      %c0_55 = arith.constant 0 : index
      %c0_56 = arith.constant 0 : index
      %c0_57 = arith.constant 0 : index
      %250 = vector.load %arg9[%c0_55, %c0_56, %c0_57] : memref<2x2x2xf32, #tpu.memory_space<vmem>>, vector<2x2x2xf32>
      tpu.vector_store %arg9[%c0_55, %c0_56, %c0_57], %249 {strides = array<i32>} : memref<2x2x2xf32, #tpu.memory_space<vmem>>, vector<2x2x2xf32>,
    } else {
    }
    %3 = arith.index_cast %arg0 : i32 to index
    %c0 = arith.constant 0 : index
    %4 = memref.load %arg1[%3, %c0] : memref<1x2xi32, #tpu.memory_space<smem>>
    %5 = arith.index_cast %4 : i32 to index
    %c0_1 = arith.constant 0 : index
    %c0_2 = arith.constant 0 : index
    %6 = vector.load %arg3[%5, %c0_1, %c0_2] : memref<3x1x2xf32, #tpu.memory_space<vmem>>, vector<1x1x2xf32>
    %7 = vector.shape_cast %6 : vector<1x1x2xf32> to vector<1x2xf32>
    %8 = arith.index_cast %arg0 : i32 to index
    %c1 = arith.constant 1 : index
    %9 = memref.load %arg1[%8, %c1] : memref<1x2xi32, #tpu.memory_space<smem>>
    %10 = arith.index_cast %9 : i32 to index
    %c0_3 = arith.constant 0 : index
    %c0_4 = arith.constant 0 : index
    %11 = vector.load %arg3[%10, %c0_3, %c0_4] : memref<3x1x2xf32, #tpu.memory_space<vmem>>, vector<1x1x2xf32>
    %12 = vector.shape_cast %11 : vector<1x1x2xf32> to vector<1x2xf32>
    %13 = tpu.concatenate %7, %12 in 0 : vector<1x2xf32>, vector<1x2xf32> -> vector<2x2xf32>
    %c0_5 = arith.constant 0 : index
    %14 = memref.load %arg2[%c0_5] : memref<2xi32, #tpu.memory_space<smem>>
    %15 = arith.index_cast %14 : i32 to index
    %c0_6 = arith.constant 0 : index
    %c0_7 = arith.constant 0 : index
    %16 = vector.load %arg4[%15, %c0_6, %c0_7] : memref<5x1x5xf32, #tpu.memory_space<vmem>>, vector<1x1x5xf32>
    %17 = vector.shape_cast %16 : vector<1x1x5xf32> to vector<1x5xf32>
    %c1_8 = arith.constant 1 : index
    %18 = memref.load %arg2[%c1_8] : memref<2xi32, #tpu.memory_space<smem>>
    %19 = arith.index_cast %18 : i32 to index
    %c0_9 = arith.constant 0 : index
    %c0_10 = arith.constant 0 : index
    %20 = vector.load %arg4[%19, %c0_9, %c0_10] : memref<5x1x5xf32, #tpu.memory_space<vmem>>, vector<1x1x5xf32>
    %21 = vector.shape_cast %20 : vector<1x1x5xf32> to vector<1x5xf32>
    %22 = tpu.concatenate %17, %21 in 0 : vector<1x5xf32>, vector<1x5xf32> -> vector<2x5xf32>
    %c0_11 = arith.constant 0 : index
    %c0_12 = arith.constant 0 : index
    %c0_13 = arith.constant 0 : index
    %23 = vector.load %arg9[%c0_11, %c0_12, %c0_13] : memref<2x2x2xf32, #tpu.memory_space<vmem>>, vector<1x2x2xf32>
    %24 = vector.shape_cast %23 : vector<1x2x2xf32> to vector<2x2xf32>
    %c1_14 = arith.constant 1 : index
    %c0_15 = arith.constant 0 : index
    %c0_16 = arith.constant 0 : index
    %25 = vector.load %arg9[%c1_14, %c0_15, %c0_16] : memref<2x2x2xf32, #tpu.memory_space<vmem>>, vector<1x2x2xf32>
    %26 = vector.shape_cast %25 : vector<1x2x2xf32> to vector<2x2xf32>
    %c0_17 = arith.constant 0 : index
    %c0_18 = arith.constant 0 : index
    %27 = vector.load %arg7[%c0_17, %c0_18] : memref<112x8xf32, #tpu.memory_space<vmem>>, vector<2x6xf32>
    %c40 = arith.constant 40 : index
    %c0_19 = arith.constant 0 : index
    %28 = vector.load %arg7[%c40, %c0_19] : memref<112x8xf32, #tpu.memory_space<vmem>>, vector<1x6xf32>
    %29 = vector.extract_strided_slice %13 {offsets = [0, 0], sizes = [2, 1], strides = [1, 1]} : vector<2x2xf32> to vector<2x1xf32>
    %30 = vector.extract_strided_slice %27 {offsets = [0, 0], sizes = [1, 6], strides = [1, 1]} : vector<2x6xf32> to vector<1x6xf32>
    %31 = vector.broadcast %29 : vector<2x1xf32> to vector<2x6xf32>
    %32 = vector.broadcast %30 : vector<1x6xf32> to vector<2x6xf32>
    %33 = arith.mulf %31, %32 : vector<2x6xf32>
    %34 = vector.broadcast %28 : vector<1x6xf32> to vector<2x6xf32>
    %35 = arith.addf %34, %33 : vector<2x6xf32>
    %36 = vector.extract_strided_slice %13 {offsets = [0, 1], sizes = [2, 1], strides = [1, 1]} : vector<2x2xf32> to vector<2x1xf32>
    %37 = vector.extract_strided_slice %27 {offsets = [1, 0], sizes = [1, 6], strides = [1, 1]} : vector<2x6xf32> to vector<1x6xf32>
    %38 = vector.broadcast %36 : vector<2x1xf32> to vector<2x6xf32>
    %39 = vector.broadcast %37 : vector<1x6xf32> to vector<2x6xf32>
    %40 = arith.mulf %38, %39 : vector<2x6xf32>
    %41 = arith.addf %35, %40 : vector<2x6xf32>
    %c8 = arith.constant 8 : index
    %c0_20 = arith.constant 0 : index
    %42 = vector.load %arg7[%c8, %c0_20] : memref<112x8xf32, #tpu.memory_space<vmem>>, vector<5x6xf32>
    %43 = vector.extract_strided_slice %22 {offsets = [0, 0], sizes = [2, 1], strides = [1, 1]} : vector<2x5xf32> to vector<2x1xf32>
    %44 = vector.extract_strided_slice %42 {offsets = [0, 0], sizes = [1, 6], strides = [1, 1]} : vector<5x6xf32> to vector<1x6xf32>
    %45 = vector.broadcast %43 : vector<2x1xf32> to vector<2x6xf32>
    %46 = vector.broadcast %44 : vector<1x6xf32> to vector<2x6xf32>
    %47 = arith.mulf %45, %46 : vector<2x6xf32>
    %48 = vector.extract_strided_slice %22 {offsets = [0, 1], sizes = [2, 1], strides = [1, 1]} : vector<2x5xf32> to vector<2x1xf32>
    %49 = vector.extract_strided_slice %42 {offsets = [1, 0], sizes = [1, 6], strides = [1, 1]} : vector<5x6xf32> to vector<1x6xf32>
    %50 = vector.broadcast %48 : vector<2x1xf32> to vector<2x6xf32>
    %51 = vector.broadcast %49 : vector<1x6xf32> to vector<2x6xf32>
    %52 = arith.mulf %50, %51 : vector<2x6xf32>
    %53 = arith.addf %47, %52 : vector<2x6xf32>
    %54 = vector.extract_strided_slice %22 {offsets = [0, 2], sizes = [2, 1], strides = [1, 1]} : vector<2x5xf32> to vector<2x1xf32>
    %55 = vector.extract_strided_slice %42 {offsets = [2, 0], sizes = [1, 6], strides = [1, 1]} : vector<5x6xf32> to vector<1x6xf32>
    %56 = vector.broadcast %54 : vector<2x1xf32> to vector<2x6xf32>
    %57 = vector.broadcast %55 : vector<1x6xf32> to vector<2x6xf32>
    %58 = arith.mulf %56, %57 : vector<2x6xf32>
    %59 = arith.addf %53, %58 : vector<2x6xf32>
    %60 = vector.extract_strided_slice %22 {offsets = [0, 3], sizes = [2, 1], strides = [1, 1]} : vector<2x5xf32> to vector<2x1xf32>
    %61 = vector.extract_strided_slice %42 {offsets = [3, 0], sizes = [1, 6], strides = [1, 1]} : vector<5x6xf32> to vector<1x6xf32>
    %62 = vector.broadcast %60 : vector<2x1xf32> to vector<2x6xf32>
    %63 = vector.broadcast %61 : vector<1x6xf32> to vector<2x6xf32>
    %64 = arith.mulf %62, %63 : vector<2x6xf32>
    %65 = arith.addf %59, %64 : vector<2x6xf32>
    %66 = vector.extract_strided_slice %22 {offsets = [0, 4], sizes = [2, 1], strides = [1, 1]} : vector<2x5xf32> to vector<2x1xf32>
    %67 = vector.extract_strided_slice %42 {offsets = [4, 0], sizes = [1, 6], strides = [1, 1]} : vector<5x6xf32> to vector<1x6xf32>
    %68 = vector.broadcast %66 : vector<2x1xf32> to vector<2x6xf32>
    %69 = vector.broadcast %67 : vector<1x6xf32> to vector<2x6xf32>
    %70 = arith.mulf %68, %69 : vector<2x6xf32>
    %71 = arith.addf %65, %70 : vector<2x6xf32>
    %72 = arith.addf %41, %71 : vector<2x6xf32>
    %c16 = arith.constant 16 : index
    %c0_21 = arith.constant 0 : index
    %73 = vector.load %arg7[%c16, %c0_21] : memref<112x8xf32, #tpu.memory_space<vmem>>, vector<2x6xf32>
    %c48 = arith.constant 48 : index
    %c0_22 = arith.constant 0 : index
    %74 = vector.load %arg7[%c48, %c0_22] : memref<112x8xf32, #tpu.memory_space<vmem>>, vector<1x6xf32>
    %75 = vector.extract_strided_slice %24 {offsets = [0, 0], sizes = [2, 1], strides = [1, 1]} : vector<2x2xf32> to vector<2x1xf32>
    %76 = vector.extract_strided_slice %73 {offsets = [0, 0], sizes = [1, 6], strides = [1, 1]} : vector<2x6xf32> to vector<1x6xf32>
    %77 = vector.broadcast %75 : vector<2x1xf32> to vector<2x6xf32>
    %78 = vector.broadcast %76 : vector<1x6xf32> to vector<2x6xf32>
    %79 = arith.mulf %77, %78 : vector<2x6xf32>
    %80 = vector.broadcast %74 : vector<1x6xf32> to vector<2x6xf32>
    %81 = arith.addf %80, %79 : vector<2x6xf32>
    %82 = vector.extract_strided_slice %24 {offsets = [0, 1], sizes = [2, 1], strides = [1, 1]} : vector<2x2xf32> to vector<2x1xf32>
    %83 = vector.extract_strided_slice %73 {offsets = [1, 0], sizes = [1, 6], strides = [1, 1]} : vector<2x6xf32> to vector<1x6xf32>
    %84 = vector.broadcast %82 : vector<2x1xf32> to vector<2x6xf32>
    %85 = vector.broadcast %83 : vector<1x6xf32> to vector<2x6xf32>
    %86 = arith.mulf %84, %85 : vector<2x6xf32>
    %87 = arith.addf %81, %86 : vector<2x6xf32>
    %88 = vector.extract_strided_slice %72 {offsets = [0, 0], sizes = [2, 2], strides = [1, 1]} : vector<2x6xf32> to vector<2x2xf32>
    %89 = vector.extract_strided_slice %87 {offsets = [0, 0], sizes = [2, 2], strides = [1, 1]} : vector<2x6xf32> to vector<2x2xf32>
    %90 = arith.addf %88, %89 : vector<2x2xf32>
    %91 = arith.negf %90 : vector<2x2xf32>
    %92 = math.exp %91 : vector<2x2xf32>
    %cst = arith.constant 1.000000e+00 : f32
    %93 = vector.broadcast %cst : f32 to vector<2x2xf32>
    %94 = arith.addf %93, %92 : vector<2x2xf32>
    %95 = arith.divf %93, %94 : vector<2x2xf32>
    %96 = vector.extract_strided_slice %72 {offsets = [0, 2], sizes = [2, 2], strides = [1, 1]} : vector<2x6xf32> to vector<2x2xf32>
    %97 = vector.extract_strided_slice %87 {offsets = [0, 2], sizes = [2, 2], strides = [1, 1]} : vector<2x6xf32> to vector<2x2xf32>
    %98 = arith.addf %96, %97 : vector<2x2xf32>
    %99 = arith.negf %98 : vector<2x2xf32>
    %100 = math.exp %99 : vector<2x2xf32>
    %cst_23 = arith.constant 1.000000e+00 : f32
    %101 = vector.broadcast %cst_23 : f32 to vector<2x2xf32>
    %102 = arith.addf %101, %100 : vector<2x2xf32>
    %103 = arith.divf %101, %102 : vector<2x2xf32>
    %104 = vector.extract_strided_slice %72 {offsets = [0, 4], sizes = [2, 2], strides = [1, 1]} : vector<2x6xf32> to vector<2x2xf32>
    %105 = vector.extract_strided_slice %87 {offsets = [0, 4], sizes = [2, 2], strides = [1, 1]} : vector<2x6xf32> to vector<2x2xf32>
    %106 = arith.mulf %95, %105 : vector<2x2xf32>
    %107 = arith.addf %104, %106 : vector<2x2xf32>
    %108 = math.tanh %107 : vector<2x2xf32>
    %cst_24 = arith.constant 1.000000e+00 : f32
    %109 = vector.broadcast %cst_24 : f32 to vector<2x2xf32>
    %110 = arith.subf %109, %103 : vector<2x2xf32>
    %111 = arith.mulf %110, %108 : vector<2x2xf32>
    %112 = arith.mulf %103, %24 : vector<2x2xf32>
    %113 = arith.addf %111, %112 : vector<2x2xf32>
    %c24 = arith.constant 24 : index
    %c0_25 = arith.constant 0 : index
    %114 = vector.load %arg7[%c24, %c0_25] : memref<112x8xf32, #tpu.memory_space<vmem>>, vector<2x6xf32>
    %c56 = arith.constant 56 : index
    %c0_26 = arith.constant 0 : index
    %115 = vector.load %arg7[%c56, %c0_26] : memref<112x8xf32, #tpu.memory_space<vmem>>, vector<1x6xf32>
    %116 = vector.extract_strided_slice %113 {offsets = [0, 0], sizes = [2, 1], strides = [1, 1]} : vector<2x2xf32> to vector<2x1xf32>
    %117 = vector.extract_strided_slice %114 {offsets = [0, 0], sizes = [1, 6], strides = [1, 1]} : vector<2x6xf32> to vector<1x6xf32>
    %118 = vector.broadcast %116 : vector<2x1xf32> to vector<2x6xf32>
    %119 = vector.broadcast %117 : vector<1x6xf32> to vector<2x6xf32>
    %120 = arith.mulf %118, %119 : vector<2x6xf32>
    %121 = vector.broadcast %115 : vector<1x6xf32> to vector<2x6xf32>
    %122 = arith.addf %121, %120 : vector<2x6xf32>
    %123 = vector.extract_strided_slice %113 {offsets = [0, 1], sizes = [2, 1], strides = [1, 1]} : vector<2x2xf32> to vector<2x1xf32>
    %124 = vector.extract_strided_slice %114 {offsets = [1, 0], sizes = [1, 6], strides = [1, 1]} : vector<2x6xf32> to vector<1x6xf32>
    %125 = vector.broadcast %123 : vector<2x1xf32> to vector<2x6xf32>
    %126 = vector.broadcast %124 : vector<1x6xf32> to vector<2x6xf32>
    %127 = arith.mulf %125, %126 : vector<2x6xf32>
    %128 = arith.addf %122, %127 : vector<2x6xf32>
    %c32 = arith.constant 32 : index
    %c0_27 = arith.constant 0 : index
    %129 = vector.load %arg7[%c32, %c0_27] : memref<112x8xf32, #tpu.memory_space<vmem>>, vector<2x6xf32>
    %c64 = arith.constant 64 : index
    %c0_28 = arith.constant 0 : index
    %130 = vector.load %arg7[%c64, %c0_28] : memref<112x8xf32, #tpu.memory_space<vmem>>, vector<1x6xf32>
    %131 = vector.extract_strided_slice %26 {offsets = [0, 0], sizes = [2, 1], strides = [1, 1]} : vector<2x2xf32> to vector<2x1xf32>
    %132 = vector.extract_strided_slice %129 {offsets = [0, 0], sizes = [1, 6], strides = [1, 1]} : vector<2x6xf32> to vector<1x6xf32>
    %133 = vector.broadcast %131 : vector<2x1xf32> to vector<2x6xf32>
    %134 = vector.broadcast %132 : vector<1x6xf32> to vector<2x6xf32>
    %135 = arith.mulf %133, %134 : vector<2x6xf32>
    %136 = vector.broadcast %130 : vector<1x6xf32> to vector<2x6xf32>
    %137 = arith.addf %136, %135 : vector<2x6xf32>
    %138 = vector.extract_strided_slice %26 {offsets = [0, 1], sizes = [2, 1], strides = [1, 1]} : vector<2x2xf32> to vector<2x1xf32>
    %139 = vector.extract_strided_slice %129 {offsets = [1, 0], sizes = [1, 6], strides = [1, 1]} : vector<2x6xf32> to vector<1x6xf32>
    %140 = vector.broadcast %138 : vector<2x1xf32> to vector<2x6xf32>
    %141 = vector.broadcast %139 : vector<1x6xf32> to vector<2x6xf32>
    %142 = arith.mulf %140, %141 : vector<2x6xf32>
    %143 = arith.addf %137, %142 : vector<2x6xf32>
    %144 = vector.extract_strided_slice %128 {offsets = [0, 0], sizes = [2, 2], strides = [1, 1]} : vector<2x6xf32> to vector<2x2xf32>
    %145 = vector.extract_strided_slice %143 {offsets = [0, 0], sizes = [2, 2], strides = [1, 1]} : vector<2x6xf32> to vector<2x2xf32>
    %146 = arith.addf %144, %145 : vector<2x2xf32>
    %147 = arith.negf %146 : vector<2x2xf32>
    %148 = math.exp %147 : vector<2x2xf32>
    %cst_29 = arith.constant 1.000000e+00 : f32
    %149 = vector.broadcast %cst_29 : f32 to vector<2x2xf32>
    %150 = arith.addf %149, %148 : vector<2x2xf32>
    %151 = arith.divf %149, %150 : vector<2x2xf32>
    %152 = vector.extract_strided_slice %128 {offsets = [0, 2], sizes = [2, 2], strides = [1, 1]} : vector<2x6xf32> to vector<2x2xf32>
    %153 = vector.extract_strided_slice %143 {offsets = [0, 2], sizes = [2, 2], strides = [1, 1]} : vector<2x6xf32> to vector<2x2xf32>
    %154 = arith.addf %152, %153 : vector<2x2xf32>
    %155 = arith.negf %154 : vector<2x2xf32>
    %156 = math.exp %155 : vector<2x2xf32>
    %cst_30 = arith.constant 1.000000e+00 : f32
    %157 = vector.broadcast %cst_30 : f32 to vector<2x2xf32>
    %158 = arith.addf %157, %156 : vector<2x2xf32>
    %159 = arith.divf %157, %158 : vector<2x2xf32>
    %160 = vector.extract_strided_slice %128 {offsets = [0, 4], sizes = [2, 2], strides = [1, 1]} : vector<2x6xf32> to vector<2x2xf32>
    %161 = vector.extract_strided_slice %143 {offsets = [0, 4], sizes = [2, 2], strides = [1, 1]} : vector<2x6xf32> to vector<2x2xf32>
    %162 = arith.mulf %151, %161 : vector<2x2xf32>
    %163 = arith.addf %160, %162 : vector<2x2xf32>
    %164 = math.tanh %163 : vector<2x2xf32>
    %cst_31 = arith.constant 1.000000e+00 : f32
    %165 = vector.broadcast %cst_31 : f32 to vector<2x2xf32>
    %166 = arith.subf %165, %159 : vector<2x2xf32>
    %167 = arith.mulf %166, %164 : vector<2x2xf32>
    %168 = arith.mulf %159, %26 : vector<2x2xf32>
    %169 = arith.addf %167, %168 : vector<2x2xf32>
    %c0_32 = arith.constant 0 : index
    %c0_33 = arith.constant 0 : index
    %c0_34 = arith.constant 0 : index
    %170 = vector.load %arg9[%c0_32, %c0_33, %c0_34] : memref<2x2x2xf32, #tpu.memory_space<vmem>>, vector<1x2x2xf32>
    %171 = vector.shape_cast %170 : vector<1x2x2xf32> to vector<2x2xf32>
    %172 = vector.shape_cast %113 : vector<2x2xf32> to vector<1x2x2xf32>
    tpu.vector_store %arg9[%c0_32, %c0_33, %c0_34], %172 {strides = array<i32>} : memref<2x2x2xf32, #tpu.memory_space<vmem>>, vector<1x2x2xf32>,
    %c1_35 = arith.constant 1 : index
    %c0_36 = arith.constant 0 : index
    %c0_37 = arith.constant 0 : index
    %173 = vector.load %arg9[%c1_35, %c0_36, %c0_37] : memref<2x2x2xf32, #tpu.memory_space<vmem>>, vector<1x2x2xf32>
    %174 = vector.shape_cast %173 : vector<1x2x2xf32> to vector<2x2xf32>
    %175 = vector.shape_cast %169 : vector<2x2xf32> to vector<1x2x2xf32>
    tpu.vector_store %arg9[%c1_35, %c0_36, %c0_37], %175 {strides = array<i32>} : memref<2x2x2xf32, #tpu.memory_space<vmem>>, vector<1x2x2xf32>,
    %c0_38 = arith.constant 0 : index
    %c0_39 = arith.constant 0 : index
    %c0_40 = arith.constant 0 : index
    %176 = vector.load %arg6[%c0_38, %c0_39, %c0_40] : memref<2x2x8xf32, #tpu.memory_space<vmem>>, vector<2x2x8xf32>
    %177 = vector.extract_strided_slice %169 {offsets = [0, 0], sizes = [2, 1], strides = [1, 1]} : vector<2x2xf32> to vector<2x1xf32>
    %178 = vector.extract_strided_slice %176 {offsets = [0, 0, 0], sizes = [2, 1, 8], strides = [1, 1, 1]} : vector<2x2x8xf32> to vector<2x1x8xf32>
    %179 = vector.shape_cast %178 : vector<2x1x8xf32> to vector<2x8xf32>
    %180 = vector.broadcast %177 : vector<2x1xf32> to vector<2x8xf32>
    %181 = arith.mulf %180, %179 : vector<2x8xf32>
    %182 = vector.extract_strided_slice %169 {offsets = [0, 1], sizes = [2, 1], strides = [1, 1]} : vector<2x2xf32> to vector<2x1xf32>
    %183 = vector.extract_strided_slice %176 {offsets = [0, 1, 0], sizes = [2, 1, 8], strides = [1, 1, 1]} : vector<2x2x8xf32> to vector<2x1x8xf32>
    %184 = vector.shape_cast %183 : vector<2x1x8xf32> to vector<2x8xf32>
    %185 = vector.broadcast %182 : vector<2x1xf32> to vector<2x8xf32>
    %186 = arith.mulf %185, %184 : vector<2x8xf32>
    %187 = arith.addf %181, %186 : vector<2x8xf32>
    %cst_41 = arith.constant dense<0xFF800000> : vector<2xf32>
    %188 = vector.multi_reduction <maximumf>, %187, %cst_41 [1] : vector<2x8xf32> to vector<2xf32>
    %189 = vector.shape_cast %188 : vector<2xf32> to vector<2x1xf32>
    %190 = vector.broadcast %189 : vector<2x1xf32> to vector<2x8xf32>
    %191 = arith.subf %187, %190 : vector<2x8xf32>
    %192 = math.exp %191 : vector<2x8xf32>
    %cst_42 = arith.constant dense<0.000000e+00> : vector<2xf32>
    %193 = vector.multi_reduction <add>, %192, %cst_42 [1] : vector<2x8xf32> to vector<2xf32>
    %194 = vector.shape_cast %193 : vector<2xf32> to vector<2x1xf32>
    %195 = tpu.reciprocal %194 {approx = true} : vector<2x1xf32> -> vector<2x1xf32>
    %196 = vector.broadcast %195 : vector<2x1xf32> to vector<2x8xf32>
    %197 = arith.mulf %192, %196 : vector<2x8xf32>
    %198 = vector.shape_cast %197 : vector<2x8xf32> to vector<2x1x8xf32>
    %199 = vector.broadcast %198 : vector<2x1x8xf32> to vector<2x2x8xf32>
    %200 = arith.mulf %199, %176 : vector<2x2x8xf32>
    %cst_43 = arith.constant dense<0.000000e+00> : vector<2x2xf32>
    %201 = vector.multi_reduction <add>, %200, %cst_43 [2] : vector<2x2x8xf32> to vector<2x2xf32>
    %c72 = arith.constant 72 : index
    %c0_44 = arith.constant 0 : index
    %202 = vector.load %arg7[%c72, %c0_44] : memref<112x8xf32, #tpu.memory_space<vmem>>, vector<2x2xf32>
    %203 = vector.extract_strided_slice %201 {offsets = [0, 0], sizes = [2, 1], strides = [1, 1]} : vector<2x2xf32> to vector<2x1xf32>
    %204 = vector.extract_strided_slice %202 {offsets = [0, 0], sizes = [1, 2], strides = [1, 1]} : vector<2x2xf32> to vector<1x2xf32>
    %205 = vector.broadcast %203 : vector<2x1xf32> to vector<2x2xf32>
    %206 = vector.broadcast %204 : vector<1x2xf32> to vector<2x2xf32>
    %207 = arith.mulf %205, %206 : vector<2x2xf32>
    %208 = vector.extract_strided_slice %201 {offsets = [0, 1], sizes = [2, 1], strides = [1, 1]} : vector<2x2xf32> to vector<2x1xf32>
    %209 = vector.extract_strided_slice %202 {offsets = [1, 0], sizes = [1, 2], strides = [1, 1]} : vector<2x2xf32> to vector<1x2xf32>
    %210 = vector.broadcast %208 : vector<2x1xf32> to vector<2x2xf32>
    %211 = vector.broadcast %209 : vector<1x2xf32> to vector<2x2xf32>
    %212 = arith.mulf %210, %211 : vector<2x2xf32>
    %213 = arith.addf %207, %212 : vector<2x2xf32>
    %c80 = arith.constant 80 : index
    %c0_45 = arith.constant 0 : index
    %214 = vector.load %arg7[%c80, %c0_45] : memref<112x8xf32, #tpu.memory_space<vmem>>, vector<2x2xf32>
    %c88 = arith.constant 88 : index
    %c0_46 = arith.constant 0 : index
    %215 = vector.load %arg7[%c88, %c0_46] : memref<112x8xf32, #tpu.memory_space<vmem>>, vector<1x2xf32>
    %216 = vector.extract_strided_slice %169 {offsets = [0, 0], sizes = [2, 1], strides = [1, 1]} : vector<2x2xf32> to vector<2x1xf32>
    %217 = vector.extract_strided_slice %214 {offsets = [0, 0], sizes = [1, 2], strides = [1, 1]} : vector<2x2xf32> to vector<1x2xf32>
    %218 = vector.broadcast %216 : vector<2x1xf32> to vector<2x2xf32>
    %219 = vector.broadcast %217 : vector<1x2xf32> to vector<2x2xf32>
    %220 = arith.mulf %218, %219 : vector<2x2xf32>
    %221 = vector.broadcast %215 : vector<1x2xf32> to vector<2x2xf32>
    %222 = arith.addf %221, %220 : vector<2x2xf32>
    %223 = vector.extract_strided_slice %169 {offsets = [0, 1], sizes = [2, 1], strides = [1, 1]} : vector<2x2xf32> to vector<2x1xf32>
    %224 = vector.extract_strided_slice %214 {offsets = [1, 0], sizes = [1, 2], strides = [1, 1]} : vector<2x2xf32> to vector<1x2xf32>
    %225 = vector.broadcast %223 : vector<2x1xf32> to vector<2x2xf32>
    %226 = vector.broadcast %224 : vector<1x2xf32> to vector<2x2xf32>
    %227 = arith.mulf %225, %226 : vector<2x2xf32>
    %228 = arith.addf %222, %227 : vector<2x2xf32>
    %229 = arith.addf %213, %228 : vector<2x2xf32>
    %230 = math.tanh %229 : vector<2x2xf32>
    %c96 = arith.constant 96 : index
    %c0_47 = arith.constant 0 : index
    %231 = vector.load %arg7[%c96, %c0_47] : memref<112x8xf32, #tpu.memory_space<vmem>>, vector<2x3xf32>
    %c104 = arith.constant 104 : index
    %c0_48 = arith.constant 0 : index
    %232 = vector.load %arg7[%c104, %c0_48] : memref<112x8xf32, #tpu.memory_space<vmem>>, vector<1x3xf32>
    %233 = vector.extract_strided_slice %230 {offsets = [0, 0], sizes = [2, 1], strides = [1, 1]} : vector<2x2xf32> to vector<2x1xf32>
    %234 = vector.extract_strided_slice %231 {offsets = [0, 0], sizes = [1, 3], strides = [1, 1]} : vector<2x3xf32> to vector<1x3xf32>
    %235 = vector.broadcast %233 : vector<2x1xf32> to vector<2x3xf32>
    %236 = vector.broadcast %234 : vector<1x3xf32> to vector<2x3xf32>
    %237 = arith.mulf %235, %236 : vector<2x3xf32>
    %238 = vector.broadcast %232 : vector<1x3xf32> to vector<2x3xf32>
    %239 = arith.addf %238, %237 : vector<2x3xf32>
    %240 = vector.extract_strided_slice %230 {offsets = [0, 1], sizes = [2, 1], strides = [1, 1]} : vector<2x2xf32> to vector<2x1xf32>
    %241 = vector.extract_strided_slice %231 {offsets = [1, 0], sizes = [1, 3], strides = [1, 1]} : vector<2x3xf32> to vector<1x3xf32>
    %242 = vector.broadcast %240 : vector<2x1xf32> to vector<2x3xf32>
    %243 = vector.broadcast %241 : vector<1x3xf32> to vector<2x3xf32>
    %244 = arith.mulf %242, %243 : vector<2x3xf32>
    %245 = arith.addf %239, %244 : vector<2x3xf32>
    %c0_49 = arith.constant 0 : index
    %c0_50 = arith.constant 0 : index
    %c0_51 = arith.constant 0 : index
    %246 = vector.load %arg8[%c0_49, %c0_50, %c0_51] : memref<1x2x3xf32, #tpu.memory_space<vmem>>, vector<1x2x3xf32>
    %247 = vector.shape_cast %246 : vector<1x2x3xf32> to vector<2x3xf32>
    %248 = vector.shape_cast %245 : vector<2x3xf32> to vector<1x2x3xf32>
    tpu.vector_store %arg8[%c0_49, %c0_50, %c0_51], %248 {strides = array<i32>} : memref<1x2x3xf32, #tpu.memory_space<vmem>>, vector<1x2x3xf32>,
    return
  }
  func.func @transform_0(%arg0: i32, %arg1: memref<1x2xi32, #tpu.memory_space<smem>>, %arg2: memref<2xi32, #tpu.memory_space<smem>>) -> (i32, i32, i32) {
    %c0_i32 = arith.constant 0 : i32
    %c0_i32_0 = arith.constant 0 : i32
    %c0_i32_1 = arith.constant 0 : i32
    %c0_i32_2 = arith.constant 0 : i32
    return %c0_i32, %c0_i32_0, %c0_i32_1 : i32, i32, i32
  }
  func.func @transform_1(%arg0: i32, %arg1: memref<1x2xi32, #tpu.memory_space<smem>>, %arg2: memref<2xi32, #tpu.memory_space<smem>>) -> (i32, i32, i32) {
    %c0_i32 = arith.constant 0 : i32
    %c0_i32_0 = arith.constant 0 : i32
    %c0_i32_1 = arith.constant 0 : i32
    %c0_i32_2 = arith.constant 0 : i32
    return %c0_i32, %c0_i32_0, %c0_i32_1 : i32, i32, i32
  }
  func.func @transform_2(%arg0: i32, %arg1: memref<1x2xi32, #tpu.memory_space<smem>>, %arg2: memref<2xi32, #tpu.memory_space<smem>>) -> (i32, i32, i32) {
    %c0_i32 = arith.constant 0 : i32
    %c0_i32_0 = arith.constant 0 : i32
    %c0_i32_1 = arith.constant 0 : i32
    %c0_i32_2 = arith.constant 0 : i32
    return %c0_i32, %c0_i32_0, %c0_i32_1 : i32, i32, i32
  }
  func.func @transform_3(%arg0: i32, %arg1: memref<1x2xi32, #tpu.memory_space<smem>>, %arg2: memref<2xi32, #tpu.memory_space<smem>>) -> (i32, i32, i32) {
    %c0_i32 = arith.constant 0 : i32
    %c0_i32_0 = arith.constant 0 : i32
    %c0_i32_1 = arith.constant 0 : i32
    %c0_i32_2 = arith.constant 0 : i32
    return %c0_i32, %c0_i32_0, %c0_i32_1 : i32, i32, i32
  }
  func.func @transform_4(%arg0: i32, %arg1: memref<1x2xi32, #tpu.memory_space<smem>>, %arg2: memref<2xi32, #tpu.memory_space<smem>>) -> (i32, i32) {
    %c0_i32 = arith.constant 0 : i32
    %c0_i32_0 = arith.constant 0 : i32
    %c0_i32_1 = arith.constant 0 : i32
    return %c0_i32, %c0_i32_0 : i32, i32
  }
  func.func @transform_5(%arg0: i32, %arg1: memref<1x2xi32, #tpu.memory_space<smem>>, %arg2: memref<2xi32, #tpu.memory_space<smem>>) -> (i32, i32, i32) {
    %c0_i32 = arith.constant 0 : i32
    %c0_i32_0 = arith.constant 0 : i32
    %c0_i32_1 = arith.constant 0 : i32
    return %arg0, %c0_i32, %c0_i32_0 : i32, i32, i32
  }
  func.func @transform_6(%arg0: i32, %arg1: memref<1x2xi32, #tpu.memory_space<smem>>, %arg2: memref<2xi32, #tpu.memory_space<smem>>) -> (i32, i32, i32) {
    %c0_i32 = arith.constant 0 : i32
    %c0_i32_0 = arith.constant 0 : i32
    %c0_i32_1 = arith.constant 0 : i32
    %c0_i32_2 = arith.constant 0 : i32
    return %c0_i32, %c0_i32_0, %c0_i32_1 : i32, i32, i32
  }
}

</mosaic_0001>

<llo_original>
// kernel: tpu_custom_call.1
$region0: #{tpu_custom_call.1}
  #allocation0 [shape = 'u32[]', space=smem, size = 0x4, offset = 0x4, fixed_abs, tag = 'smem constant byte address 0x4 - core index']
  #allocation1 [shape = 'u32[144,128]{1,0:T(1,128)}', space=vmem, size = 0x12000, scoped, tag = 'internal scratch']
  #allocation2 [shape = 's32[1]{0}', space=sflag, size = 0x4, scoped, tag = 'scoped memory for tpu_custom_call.1']
  #allocation3 [shape = 'u8[512]{0}', space=smem, size = 0x200, scoped, tag = 'prefetched SMEM operand 0']
  #allocation4 [shape = 'u8[512]{0}', space=smem, size = 0x200, scoped, tag = 'prefetched SMEM operand 1']
  %s0 = inlined_call_operand.vmem [shape: s32[1,2], index: 0, kind: input, shape index: {}]
  %s1 = inlined_call_operand.vmem [shape: s32[2], index: 1, kind: input, shape index: {}]
  %s2 = inlined_call_operand.vmem [shape: f32[3,1,2], index: 2, kind: input, shape index: {}]
  %s3 = inlined_call_operand.vmem [shape: f32[5,1,5], index: 3, kind: input, shape index: {}]
  %s4 = inlined_call_operand.hbm [shape: f32[2,2,2], index: 4, kind: input, shape index: {}, may-alias: {4,8}]
  %s5 = inlined_call_operand.vmem [shape: f32[2,2,8], index: 5, kind: input, shape index: {}]
  %s6 = inlined_call_operand.vmem [shape: f32[112,8], index: 6, kind: input, shape index: {}]
  %s7 = inlined_call_operand.hbm [shape: f32[1,2,3], index: 7, kind: output, shape index: {0}]
  %s8 = inlined_call_operand.hbm [shape: f32[2,2,2], index: 8, kind: output, shape index: {1}, may-alias: {4,8}]
  %9 = xla_tuple %s7, %s8
  %s10 = sld [smem:[#allocation0]]
  $region46: #{tpu_custom_call.1} parent=0
    _
  %s12 = ssub.s32 1, %s10
  %s13 = scalar_select 0, %s12, %s10
  %s14 = sshll.u32 %s0, 4
  %s15 = int_to_ptr.vmem [resolvable:$true] %s14
  %17 = dma.vmem_to_smem %s15, 16, [#allocation3], [#allocation2]
  %s18 = sshll.u32 %s1, 4
  %s19 = int_to_ptr.vmem [resolvable:$true] %s18
  %21 = dma.vmem_to_smem %s19, 16, [#allocation4], [#allocation2]
  %22 = dma.done [#allocation2], 32
  %23 = sfence
  $region1: #{tpu_custom_call.1} parent=0
    #allocation5 [shape = 'u8[2048]{0}', space=vmem, size = 0x800, scoped, tag = 'input window, operand 4, single buffered']
    #allocation6 [shape = 's32[1]{0}', space=sflag, size = 0x4, scoped, tag = 'scoped memory for tpu_custom_call.1']
    #allocation7 [shape = 's32[1]{0}', space=sflag, size = 0x4, scoped, tag = 'scoped memory for tpu_custom_call.1']
    #allocation8 [shape = 'u8[1024]{0}', space=vmem, size = 0x400, scoped, tag = 'output window, operand 0, single buffered']
    #allocation9 [shape = 'u8[2048]{0}', space=vmem, size = 0x800, scoped, tag = 'output window, operand 1, single buffered']
    #allocation10 [shape = 's32[1]{0}', space=sflag, size = 0x4, scoped, tag = 'scoped memory for tpu_custom_call.1']
    %24 = vsyncpa [#allocation6], 0
    %25 = vsyncpa [#allocation7], 0
    %26 = vsyncpa [#allocation10], 0
    // Predicated region
    $region2: #{tpu_custom_call.1} parent=1 // pred_check
      _
    $region3: #{tpu_custom_call.1} parent=1 // pred_check_branch
      %28 = sbr.rel (0) target = $region5
    $region4: #{tpu_custom_call.1} parent=1 // pred_region
      _
    $region5: #{tpu_custom_call.1} parent=1 // pred_fallthru
      _
    // Predicated region
    $region6: #{tpu_custom_call.1} parent=1 // pred_check
      _
    $region7: #{tpu_custom_call.1} parent=1 // pred_check_branch
      %30 = sbr.rel (0) target = $region9
    $region8: #{tpu_custom_call.1} parent=1 // pred_region
      _
    $region9: #{tpu_custom_call.1} parent=1 // pred_fallthru
      _
    // Predicated region
    $region10: #{tpu_custom_call.1} parent=1 // pred_check
      _
    $region11: #{tpu_custom_call.1} parent=1 // pred_check_branch
      %32 = sbr.rel (0) target = $region13
    $region12: #{tpu_custom_call.1} parent=1 // pred_region
      %s34 = ssub.s32 64, 64
      %35 = vsyncadd [#allocation6], %s34
      %s36 = sshll.u32 [#allocation5], 4
      %s37 = int_to_ptr.vmem [resolvable:$true] %s36
      %42 = dma.hbm_to_vmem [thread:$0]  %s4, 64, %s37, [#allocation6], 32, 32, 2
    $region13: #{tpu_custom_call.1} parent=1 // pred_fallthru
      _
    // Predicated region
    $region14: #{tpu_custom_call.1} parent=1 // pred_check
      _
    $region15: #{tpu_custom_call.1} parent=1 // pred_check_branch
      %44 = sbr.rel (0) target = $region17
    $region16: #{tpu_custom_call.1} parent=1 // pred_region
      _
    $region17: #{tpu_custom_call.1} parent=1 // pred_fallthru
      _
    // Predicated region
    $region18: #{tpu_custom_call.1} parent=1 // pred_check
      _
    $region19: #{tpu_custom_call.1} parent=1 // pred_check_branch
      %46 = sbr.rel (0) target = $region21
    $region20: #{tpu_custom_call.1} parent=1 // pred_region
      _
    $region21: #{tpu_custom_call.1} parent=1 // pred_fallthru
      _
    // Predicated region
    $region22: #{tpu_custom_call.1} parent=1 // pred_check
      _
    $region23: #{tpu_custom_call.1} parent=1 // pred_check_branch
      %48 = sbr.rel (0) target = $region25
    $region24: #{tpu_custom_call.1} parent=1 // pred_region
      %49 = dma.done [#allocation6], 64
    $region25: #{tpu_custom_call.1} parent=1 // pred_fallthru
      _
    %p50 = scmp.eq.s32.totalorder 0, 0
    // Predicated region
    $region26: #{tpu_custom_call.1} parent=1 // pred_check
      %p51 = pneg %p50
    $region27: #{tpu_custom_call.1} parent=1 // pred_check_branch
      %53 = sbr.rel (%p51) target = $region29
    $region28: #{tpu_custom_call.1} parent=1 // pred_region
      %v54 = vld [vmem:[#allocation5] sm:$0x3]
      %v55 = vld [vmem:[#allocation5 + $0x2] sm:$0x3]
      %vm56 = vcmask 9216
      %57 = vst.msk [vmem:[#allocation9] sm:$0x3] %vm56, %v54
      %58 = vst.msk [vmem:[#allocation9 + $0x2] sm:$0x3] %vm56, %v55
    $region29: #{tpu_custom_call.1} parent=1 // pred_fallthru
      _
    %s59 = smul.u32 0, 128
    %s60 = sld [smem:[#allocation3 + %s59]]
    %s61 = scalar_lea.vmem %s2, %s60
    %v62 = vld [vmem:[%s61] sm:$0x1]
    %s63 = sadd.s32 %s59, 1
    %s64 = sld [smem:[#allocation3 + %s63]]
    %s65 = scalar_lea.vmem %s2, %s64
    %v66 = vld [vmem:[%s65] sm:$0x1]
    %v68 = vlaneseq
    %v69 = vshrl.u32 %v68, 7
    %v70 = vsub.s32 0, %v69
    %v71 = vrot.slane %v66, %v70
    %vm73 = vcmask 1040384
    %v74 = vsel %vm73, %v62, %v71
    %s75 = sld [smem:[#allocation4]]
    %s76 = scalar_lea.vmem %s3, %s75
    %v77 = vld [vmem:[%s76] sm:$0x1]
    %s78 = sld [smem:[#allocation4 + $0x1]]
    %s79 = scalar_lea.vmem %s3, %s78
    %v80 = vld [vmem:[%s79] sm:$0x1]
    %v82 = vlaneseq
    %v83 = vshrl.u32 %v82, 7
    %v84 = vsub.s32 0, %v83
    %v85 = vrot.slane %v80, %v84
    %v87 = vsel %vm73, %v77, %v85
    %v88 = vld [vmem:[#allocation9] sm:$0x3]
    %s89 = scalar_lea.vmem [#allocation9], 2
    %v90 = vld [vmem:[%s89] sm:$0x3]
    %v91 = vld [vmem:[%s6] sm:$0x3]
    %v92 = vld [vmem:[%s6 + $0x28] sm:$0x1]
    %94 = vset.pattern.permute.xlu0 0
    %95 = vperm.xlu0 %94, %v74
    %v96 = vpop.permute.xlu0 %95
    %v98 = vlaneseq
    %v99 = vshrl.u32 %v98, 7
    %v100 = vsub.s32 0, %v99
    %v101 = vrot.slane %v91, %v100
    %v102 = vmul.f32 %v96, %v101
    %v103 = vlaneseq
    %v104 = vshrl.u32 %v103, 7
    %v105 = vsub.s32 0, %v104
    %v106 = vrot.slane %v92, %v105
    %v107 = vadd.f32 %v106, %v102
    %108 = vset.pattern.permute.xlu0 1
    %109 = vperm.xlu0 %108, %v74
    %v110 = vpop.permute.xlu0 %109
    %v112 = vlaneseq
    %v113 = vshrl.u32 %v112, 7
    %v114 = vsub.s32 1, %v113
    %v115 = vrot.slane %v91, %v114
    %v116 = vmul.f32 %v110, %v115
    %v117 = vadd.f32 %v107, %v116
    %v118 = vld [vmem:[%s6 + $0x8] sm:$0x1f]
    %120 = vset.pattern.permute.xlu0 0
    %121 = vperm.xlu0 %120, %v87
    %v122 = vpop.permute.xlu0 %121
    %v124 = vlaneseq
    %v125 = vshrl.u32 %v124, 7
    %v126 = vsub.s32 0, %v125
    %v127 = vrot.slane %v118, %v126
    %v128 = vmul.f32 %v122, %v127
    %129 = vset.pattern.permute.xlu0 1
    %130 = vperm.xlu0 %129, %v87
    %v131 = vpop.permute.xlu0 %130
    %v133 = vlaneseq
    %v134 = vshrl.u32 %v133, 7
    %v135 = vsub.s32 1, %v134
    %v136 = vrot.slane %v118, %v135
    %v137 = vmul.f32 %v131, %v136
    %v138 = vadd.f32 %v128, %v137
    %139 = vset.pattern.permute.xlu0 2
    %140 = vperm.xlu0 %139, %v87
    %v141 = vpop.permute.xlu0 %140
    %v143 = vlaneseq
    %v144 = vshrl.u32 %v143, 7
    %v145 = vsub.s32 2, %v144
    %v146 = vrot.slane %v118, %v145
    %v147 = vmul.f32 %v141, %v146
    %v148 = vadd.f32 %v138, %v147
    %149 = vset.pattern.permute.xlu0 3
    %150 = vperm.xlu0 %149, %v87
    %v151 = vpop.permute.xlu0 %150
    %v153 = vlaneseq
    %v154 = vshrl.u32 %v153, 7
    %v155 = vsub.s32 3, %v154
    %v156 = vrot.slane %v118, %v155
    %v157 = vmul.f32 %v151, %v156
    %v158 = vadd.f32 %v148, %v157
    %159 = vset.pattern.permute.xlu0 4
    %160 = vperm.xlu0 %159, %v87
    %v161 = vpop.permute.xlu0 %160
    %v163 = vlaneseq
    %v164 = vshrl.u32 %v163, 7
    %v165 = vsub.s32 4, %v164
    %v166 = vrot.slane %v118, %v165
    %v167 = vmul.f32 %v161, %v166
    %v168 = vadd.f32 %v158, %v167
    %v169 = vadd.f32 %v117, %v168
    %v170 = vld [vmem:[%s6 + $0x10] sm:$0x3]
    %v171 = vld [vmem:[%s6 + $0x30] sm:$0x1]
    %173 = vset.pattern.permute.xlu0 0
    %174 = vperm.xlu0 %173, %v88
    %v175 = vpop.permute.xlu0 %174
    %v177 = vlaneseq
    %v178 = vshrl.u32 %v177, 7
    %v179 = vsub.s32 0, %v178
    %v180 = vrot.slane %v170, %v179
    %v181 = vmul.f32 %v175, %v180
    %v182 = vlaneseq
    %v183 = vshrl.u32 %v182, 7
    %v184 = vsub.s32 0, %v183
    %v185 = vrot.slane %v171, %v184
    %v186 = vadd.f32 %v185, %v181
    %187 = vset.pattern.permute.xlu0 1
    %188 = vperm.xlu0 %187, %v88
    %v189 = vpop.permute.xlu0 %188
    %v191 = vlaneseq
    %v192 = vshrl.u32 %v191, 7
    %v193 = vsub.s32 1, %v192
    %v194 = vrot.slane %v170, %v193
    %v195 = vmul.f32 %v189, %v194
    %v196 = vadd.f32 %v186, %v195
    %v197 = vadd.f32 %v169, %v196
    %v198 = vxor.u32 %v197, 2147483648
    %v199 = vmul.f32 %v198, 1.442695
    %v200 = vpow.pop %v199
    %v201 = vadd.f32 %v200, 1.0
    %v202 = vrcp.pop %v201
    %v203 = vmul.f32 1.0, %v202
    %205 = vrot.lane.b32.xlu0 %v196, 124
    %v206 = vpop.permute.xlu0 %205
    %v208 = vmul.f32 %v203, %v206
    %210 = vrot.lane.b32.xlu0 %v208, 4
    %v211 = vpop.permute.xlu0 %210
    %v213 = vadd.f32 %v169, %v211
    %v214 = vtanh.pop %v213
    %v215 = vsub.f32 1.0, %v203
    %217 = vrot.lane.b32.xlu0 %v214, 126
    %v218 = vpop.permute.xlu0 %217
    %v220 = vmul.f32 %v215, %v218
    %221 = vrot.lane.b32.xlu0 %v88, 2
    %v222 = vpop.permute.xlu0 %221
    %v224 = vmul.f32 %v203, %v222
    %v225 = vadd.f32 %v220, %v224
    %v226 = vld [vmem:[%s6 + $0x18] sm:$0x3]
    %v227 = vld [vmem:[%s6 + $0x38] sm:$0x1]
    %229 = vset.pattern.permute.xlu0 2
    %230 = vperm.xlu0 %229, %v225
    %v231 = vpop.permute.xlu0 %230
    %v233 = vlaneseq
    %v234 = vshrl.u32 %v233, 7
    %v235 = vsub.s32 0, %v234
    %v236 = vrot.slane %v226, %v235
    %v237 = vmul.f32 %v231, %v236
    %v238 = vlaneseq
    %v239 = vshrl.u32 %v238, 7
    %v240 = vsub.s32 0, %v239
    %v241 = vrot.slane %v227, %v240
    %v242 = vadd.f32 %v241, %v237
    %243 = vset.pattern.permute.xlu0 3
    %244 = vperm.xlu0 %243, %v225
    %v245 = vpop.permute.xlu0 %244
    %v247 = vlaneseq
    %v248 = vshrl.u32 %v247, 7
    %v249 = vsub.s32 1, %v248
    %v250 = vrot.slane %v226, %v249
    %v251 = vmul.f32 %v245, %v250
    %v252 = vadd.f32 %v242, %v251
    %v253 = vld [vmem:[%s6 + $0x20] sm:$0x3]
    %v254 = vld [vmem:[%s6 + $0x40] sm:$0x1]
    %256 = vset.pattern.permute.xlu0 0
    %257 = vperm.xlu0 %256, %v90
    %v258 = vpop.permute.xlu0 %257
    %v260 = vlaneseq
    %v261 = vshrl.u32 %v260, 7
    %v262 = vsub.s32 0, %v261
    %v263 = vrot.slane %v253, %v262
    %v264 = vmul.f32 %v258, %v263
    %v265 = vlaneseq
    %v266 = vshrl.u32 %v265, 7
    %v267 = vsub.s32 0, %v266
    %v268 = vrot.slane %v254, %v267
    %v269 = vadd.f32 %v268, %v264
    %270 = vset.pattern.permute.xlu0 1
    %271 = vperm.xlu0 %270, %v90
    %v272 = vpop.permute.xlu0 %271
    %v274 = vlaneseq
    %v275 = vshrl.u32 %v274, 7
    %v276 = vsub.s32 1, %v275
    %v277 = vrot.slane %v253, %v276
    %v278 = vmul.f32 %v272, %v277
    %v279 = vadd.f32 %v269, %v278
    %v280 = vadd.f32 %v252, %v279
    %v281 = vxor.u32 %v280, 2147483648
    %v282 = vmul.f32 %v281, 1.442695
    %v283 = vpow.pop %v282
    %v284 = vadd.f32 %v283, 1.0
    %v285 = vrcp.pop %v284
    %v286 = vmul.f32 1.0, %v285
    %288 = vrot.lane.b32.xlu0 %v279, 124
    %v289 = vpop.permute.xlu0 %288
    %v291 = vmul.f32 %v286, %v289
    %293 = vrot.lane.b32.xlu0 %v291, 4
    %v294 = vpop.permute.xlu0 %293
    %v296 = vadd.f32 %v252, %v294
    %v297 = vtanh.pop %v296
    %v298 = vsub.f32 1.0, %v286
    %300 = vrot.lane.b32.xlu0 %v297, 126
    %v301 = vpop.permute.xlu0 %300
    %v303 = vmul.f32 %v298, %v301
    %304 = vrot.lane.b32.xlu0 %v90, 2
    %v305 = vpop.permute.xlu0 %304
    %v307 = vmul.f32 %v286, %v305
    %v308 = vadd.f32 %v303, %v307
    %309 = vrot.lane.b32.xlu0 %v225, 126
    %v310 = vpop.permute.xlu0 %309
    %vm312 = vcmask 9216
    %313 = vst.msk [vmem:[#allocation9] sm:$0x3] %vm312, %v310
    %315 = vrot.lane.b32.xlu0 %v308, 126
    %v316 = vpop.permute.xlu0 %315
    %318 = vst.msk [vmem:[%s89] sm:$0x3] %vm312, %v316
    %v319 = vld [vmem:[%s5] sm:$0x3]
    %v320 = vld [vmem:[%s5 + $0x2] sm:$0x3]
    %321 = vset.pattern.permute.xlu0 2
    %322 = vperm.xlu0 %321, %v308
    %v323 = vpop.permute.xlu0 %322
    %v327 = vrot.slane %v320, 7
    %vm328 = vcmask 1041409
    %v329 = vsel %vm328, %v327, %v319
    %v331 = vmul.f32 %v323, %v329
    %332 = vset.pattern.permute.xlu0 3
    %333 = vperm.xlu0 %332, %v308
    %v334 = vpop.permute.xlu0 %333
    %v336 = vrot.slane %v319, 1
    %v337 = vsel %vm328, %v320, %v336
    %v339 = vmul.f32 %v334, %v337
    %v340 = vadd.f32 %v331, %v339
    %vm341 = vcmask 58368
    %v342 = vsel %vm341, %v340, -inf
    %343 = vmax.xlane.f32.xlu0 %v342
    %v344 = vpop.xlane.xlu0 %343
    %v345 = vsub.f32 %v340, %v344
    %v346 = vmul.f32 %v345, 1.442695
    %v347 = vpow.pop %v346
    %v348 = vsel %vm341, %v347, 0.0
    %349 = vadd.xlane.f32.xlu0 %v348
    %v350 = vpop.xlane.xlu0 %349
    %v351 = vrcp.pop %v350
    %v352 = vmul.f32 %v347, %v351
    %v355 = vunpack.c.l.s4 1966171168
    %v356 = vunpack.c.0.s8 %v355
    %v357 = vlaneseq
    %v358 = vshrl.u32 %v357, 7
    %v359 = vsub.s32 %v356, %v358
    %v360 = vrot.slane %v352, %v359
    %v361 = vcombine.high %v360, %v360
    %v363 = vunpack.c.l.s4 1966171168
    %v364 = vunpack.c.0.s8 %v363
    %v365 = vlaneseq
    %v366 = vshrl.u32 %v365, 7
    %v367 = vsub.s32 %v364, %v366
    %v368 = vrot.slane %v360, %v367
    %v370 = vunpack.c.l.s4 1966171168
    %v371 = vunpack.c.0.s8 %v370
    %v372 = vlaneseq
    %v373 = vshrl.u32 %v372, 7
    %v374 = vsub.s32 %v371, %v373
    %v375 = vrot.slane %v361, %v374
    %v376 = vlaneseq
    %v377 = vshrl.u32 %v376, 7
    %v378 = vsub.s32 0, %v377
    %v379 = vrot.slane %v368, %v378
    %v380 = vlaneseq
    %v381 = vshrl.u32 %v380, 7
    %v382 = vsub.s32 0, %v381
    %v383 = vrot.slane %v375, %v382
    %v386 = vmul.f32 %v379, %v319
    %v387 = vmul.f32 %v383, %v320
    %v388 = vsel %vm341, %v386, 0.0
    %389 = vadd.xlane.f32.xlu0 %v388
    %v390 = vpop.xlane.xlu0 %389
    %v391 = vsel %vm341, %v387, 0.0
    %392 = vadd.xlane.f32.xlu0 %v391
    %v393 = vpop.xlane.xlu0 %392
    %v394 = vld [vmem:[%s6 + $0x48] sm:$0x3]
    %v395 = vlaneseq
    %v396 = vshrl.u32 %v395, 7
    %v397 = vsub.s32 0, %v396
    %v398 = vrot.slane %v390, %v397
    %v399 = vlaneseq
    %v400 = vshrl.u32 %v399, 7
    %v401 = vsub.s32 0, %v400
    %v402 = vrot.slane %v393, %v401
    %v403 = vlaneseq
    %v404 = vshrl.u32 %v403, 7
    %v405 = vsub.s32 0, %v404
    %v406 = vrot.slane %v394, %v405
    %409 = vbcast.lane.b32.xlu0 %v406, 256
    %v410 = vpop.permute.xlu0 %409
    %v412 = vmul.f32 %v398, %v410
    %v413 = vmul.f32 %v402, %v410
    %v414 = vlaneseq
    %v415 = vshrl.u32 %v414, 7
    %v416 = vsub.s32 1, %v415
    %v417 = vrot.slane %v390, %v416
    %v418 = vlaneseq
    %v419 = vshrl.u32 %v418, 7
    %v420 = vsub.s32 1, %v419
    %v421 = vrot.slane %v393, %v420
    %v422 = vlaneseq
    %v423 = vshrl.u32 %v422, 7
    %v424 = vsub.s32 1, %v423
    %v425 = vrot.slane %v394, %v424
    %428 = vbcast.lane.b32.xlu0 %v425, 256
    %v429 = vpop.permute.xlu0 %428
    %v431 = vmul.f32 %v417, %v429
    %v432 = vmul.f32 %v421, %v429
    %v433 = vadd.f32 %v412, %v431
    %v434 = vadd.f32 %v413, %v432
    %v435 = vld [vmem:[%s6 + $0x50] sm:$0x3]
    %v436 = vld [vmem:[%s6 + $0x58] sm:$0x1]
    %v437 = vlaneseq
    %v438 = vshrl.u32 %v437, 7
    %v439 = vsub.s32 0, %v438
    %v440 = vrot.slane %v435, %v439
    %v441 = vmul.f32 %v323, %v440
    %v442 = vlaneseq
    %v443 = vshrl.u32 %v442, 7
    %v444 = vsub.s32 0, %v443
    %v445 = vrot.slane %v436, %v444
    %v446 = vadd.f32 %v445, %v441
    %v447 = vlaneseq
    %v448 = vshrl.u32 %v447, 7
    %v449 = vsub.s32 1, %v448
    %v450 = vrot.slane %v435, %v449
    %v451 = vmul.f32 %v334, %v450
    %v452 = vadd.f32 %v446, %v451
    %v454 = vlaneseq
    %v455 = vshrl.u32 %v454, 7
    %v456 = vsub.s32 0, %v455
    %v457 = vrot.slane %v452, %v456
    %459 = vbcast.lane.b32.xlu0 %v457, 256
    %v460 = vpop.permute.xlu0 %459
    %v461 = vlaneseq
    %v462 = vshrl.u32 %v461, 7
    %v463 = vsub.s32 1, %v462
    %v464 = vrot.slane %v452, %v463
    %466 = vbcast.lane.b32.xlu0 %v464, 256
    %v467 = vpop.permute.xlu0 %466
    %v470 = vadd.f32 %v433, %v460
    %v471 = vadd.f32 %v434, %v467
    %v472 = vtanh.pop %v470
    %v473 = vtanh.pop %v471
    %v474 = vld [vmem:[%s6 + $0x60] sm:$0x3]
    %v475 = vld [vmem:[%s6 + $0x68] sm:$0x1]
    %v476 = vlaneseq
    %v477 = vshrl.u32 %v476, 7
    %v478 = vsub.s32 0, %v477
    %v479 = vrot.slane %v472, %v478
    %v480 = vlaneseq
    %v481 = vshrl.u32 %v480, 7
    %v482 = vsub.s32 0, %v481
    %v483 = vrot.slane %v473, %v482
    %v484 = vlaneseq
    %v485 = vshrl.u32 %v484, 7
    %v486 = vsub.s32 0, %v485
    %v487 = vrot.slane %v474, %v486
    %490 = vbcast.lane.b32.xlu0 %v487, 256
    %v491 = vpop.permute.xlu0 %490
    %v493 = vmul.f32 %v479, %v491
    %v494 = vmul.f32 %v483, %v491
    %v495 = vlaneseq
    %v496 = vshrl.u32 %v495, 7
    %v497 = vsub.s32 0, %v496
    %v498 = vrot.slane %v475, %v497
    %501 = vset.pattern.permute.xlu0 0
    %502 = vperm.xlu0 %501, %v493
    %v503 = vpop.permute.xlu0 %502
    %504 = vset.pattern.permute.xlu0 0
    %505 = vperm.xlu0 %504, %v494
    %v506 = vpop.permute.xlu0 %505
    %v507 = vlaneseq
    %v508 = vand.u32 %v507, 127
    %v509 = vlaneseq
    %v510 = vshrl.u32 %v509, 7
    %v511 = vsub.s32 %v508, %v510
    %v512 = vrot.slane %v503, %v511
    %v513 = vlaneseq
    %v514 = vshrl.u32 %v513, 7
    %v515 = vsub.s32 %v508, %v514
    %v516 = vrot.slane %v506, %v515
    %v517 = vsel %vm328, %v516, %v512
    %v519 = vadd.f32 %v498, %v517
    %v520 = vlaneseq
    %v521 = vshrl.u32 %v520, 7
    %v522 = vsub.s32 1, %v521
    %v523 = vrot.slane %v472, %v522
    %v524 = vlaneseq
    %v525 = vshrl.u32 %v524, 7
    %v526 = vsub.s32 1, %v525
    %v527 = vrot.slane %v473, %v526
    %v528 = vlaneseq
    %v529 = vshrl.u32 %v528, 7
    %v530 = vsub.s32 1, %v529
    %v531 = vrot.slane %v474, %v530
    %534 = vbcast.lane.b32.xlu0 %v531, 256
    %v535 = vpop.permute.xlu0 %534
    %v537 = vmul.f32 %v523, %v535
    %v538 = vmul.f32 %v527, %v535
    %541 = vset.pattern.permute.xlu0 0
    %542 = vperm.xlu0 %541, %v537
    %v543 = vpop.permute.xlu0 %542
    %544 = vset.pattern.permute.xlu0 0
    %545 = vperm.xlu0 %544, %v538
    %v546 = vpop.permute.xlu0 %545
    %v547 = vlaneseq
    %v548 = vshrl.u32 %v547, 7
    %v549 = vsub.s32 %v508, %v548
    %v550 = vrot.slane %v543, %v549
    %v551 = vlaneseq
    %v552 = vshrl.u32 %v551, 7
    %v553 = vsub.s32 %v508, %v552
    %v554 = vrot.slane %v546, %v553
    %v555 = vsel %vm328, %v554, %v550
    %v557 = vadd.f32 %v519, %v555
    %vm558 = vcmask 17408
    %559 = vst.msk [vmem:[#allocation8] sm:$0x3] %vm558, %v557
    // Predicated region
    $region30: #{tpu_custom_call.1} parent=1 // pred_check
      _
    $region31: #{tpu_custom_call.1} parent=1 // pred_check_branch
      %561 = sbr.rel (0) target = $region33
    $region32: #{tpu_custom_call.1} parent=1 // pred_region
      %s563 = ssub.s32 32, 32
      %564 = vsyncadd [#allocation7], %s563
      %s566 = sshll.u32 [#allocation8], 4
      %s567 = int_to_ptr.vmem [resolvable:$true] %s566
      %569 = dma.vmem_to_hbm [thread:$0]  %s567, 32, %s7, [#allocation7]
    $region33: #{tpu_custom_call.1} parent=1 // pred_fallthru
      _
    // Predicated region
    $region34: #{tpu_custom_call.1} parent=1 // pred_check
      _
    $region35: #{tpu_custom_call.1} parent=1 // pred_check_branch
      %571 = sbr.rel (0) target = $region37
    $region36: #{tpu_custom_call.1} parent=1 // pred_region
      %s573 = ssub.s32 64, 64
      %574 = vsyncadd [#allocation10], %s573
      %s575 = sshll.u32 [#allocation9], 4
      %s576 = int_to_ptr.vmem [resolvable:$true] %s575
      %581 = dma.vmem_to_hbm [thread:$0]  %s576, 64, %s8, [#allocation10], 32, 32, 2
    $region37: #{tpu_custom_call.1} parent=1 // pred_fallthru
      _
    // Predicated region
    $region38: #{tpu_custom_call.1} parent=1 // pred_check
      _
    $region39: #{tpu_custom_call.1} parent=1 // pred_check_branch
      %583 = sbr.rel (0) target = $region41
    $region40: #{tpu_custom_call.1} parent=1 // pred_region
      %584 = dma.done [#allocation7], 32
    $region41: #{tpu_custom_call.1} parent=1 // pred_fallthru
      _
    // Predicated region
    $region42: #{tpu_custom_call.1} parent=1 // pred_check
      _
    $region43: #{tpu_custom_call.1} parent=1 // pred_check_branch
      %586 = sbr.rel (0) target = $region45
    $region44: #{tpu_custom_call.1} parent=1 // pred_region
      %587 = dma.done [#allocation10], 64
    $region45: #{tpu_custom_call.1} parent=1 // pred_fallthru
      _
    %588 = vsyncpa [#allocation6], 1
    %589 = vsyncpa [#allocation7], 1
    %590 = vsyncpa [#allocation10], 1

</llo_original>
